<compile_context>
chip_gen: v7x
topology: tpu7x:2x2x1
jax: 0.10.0
libtpu: 0.0.40
codegen_flags: <defaults>
</compile_context>

<pallas_src>
import functools

import numpy as np
import jax
import jax.numpy as jnp
from jax.experimental import pallas as pl
from jax.experimental.pallas import tpu as pltpu


def _yolo_loss_kernel(nchunks_ref, tgt_ref, cand_ref, out_ref, pots_ref, *,
                      B, NC, C, CHUNK, approx_recip):
    NEG = jnp.float32(-1e30)

    # Target-slab channel layout (channel-major, cells on lanes):
    #   0..C-1              raw prediction channels
    #   G+0,G+1             target x, y (raw)
    #   G+2,G+3             sqrt(target w), sqrt(target h)
    #   G+4..G+7            target x1, y1, x2, y2
    #   G+8                 target area
    #   CLS..CLS+NC-1       target classes
    #   OBJ                 object mask (float)
    G = C
    CLS = G + 9
    OBJ = CLS + NC
    TN = tgt_ref.shape[1]

    # ---- loop-invariant target geometry: only rows the hot loop needs ----
    tx1 = tgt_ref[G + 4:G + 5, :]
    ty1 = tgt_ref[G + 5:G + 6, :]
    tx2 = tgt_ref[G + 6:G + 7, :]
    ty2 = tgt_ref[G + 7:G + 8, :]
    area_t = tgt_ref[G + 8:G + 9, :]

    pots_ref[...] = jnp.full(pots_ref.shape, NEG, jnp.float32)

    n_chunks = nchunks_ref[0]

    # ---- running max IoU over valid candidate chunks, per predictor -------
    @pl.loop(0, n_chunks)
    def _(c):
        off = pl.multiple_of(c * CHUNK, CHUNK)
        cblk = cand_ref[pl.ds(off, CHUNK), :]             # (CHUNK, 5B+1)
        valid = cblk[:, 5 * B:5 * B + 1] > 0.0            # (CHUNK, 1)
        for b in range(B):
            px1 = cblk[:, b * 5 + 0:b * 5 + 1]
            py1 = cblk[:, b * 5 + 1:b * 5 + 2]
            px2 = cblk[:, b * 5 + 2:b * 5 + 3]
            py2 = cblk[:, b * 5 + 3:b * 5 + 4]
            area_p = cblk[:, b * 5 + 4:b * 5 + 5]
            iw = jnp.maximum(jnp.minimum(px2, tx2) - jnp.maximum(px1, tx1), 0.0)
            ih = jnp.maximum(jnp.minimum(py2, ty2) - jnp.maximum(py1, ty1), 0.0)
            inter = iw * ih                                # (CHUNK, TN)
            union = area_p + area_t - inter
            if approx_recip:
                # EUP approx reciprocal + one Newton-Raphson refinement.
                # (union == 0 with degenerate boxes -> NaN, same as reference.)
                r0 = pl.reciprocal(union, approx=True)
                r = r0 * (2.0 - union * r0)
                iou = inter * r
            else:
                iou = inter / union
            iou = jnp.where(valid, iou, NEG)
            cmax = jnp.max(iou, axis=0, keepdims=True)     # (1, TN)
            pots_ref[b:b + 1, :] = jnp.maximum(pots_ref[b:b + 1, :], cmax)

    # ---- finalize: O(M) per-cell losses, lane-dense ------------------------
    pots = pots_ref[...]                                   # (B, TN)
    best_ious = jnp.max(pots, axis=0, keepdims=True)       # (1, TN)

    pred = tgt_ref[0:C, :]                                  # (C, TN)
    obj = tgt_ref[OBJ:OBJ + 1, :] > 0.0                     # (1, TN)

    # first-argmax predictor selection, lane-dense
    best_box = jnp.zeros((5, TN), jnp.float32)
    chosen = jnp.zeros((1, TN), jnp.bool_)
    for b in range(B):
        is_b = jnp.logical_and(pots[b:b + 1, :] >= best_ious,
                               jnp.logical_not(chosen))
        best_box = jnp.where(is_b, pred[b * 5:(b + 1) * 5, :], best_box)
        chosen = jnp.logical_or(chosen, is_b)

    # class loss (module uses the last NC=3 channels)
    tcls = tgt_ref[CLS:CLS + NC, :]
    pred_cls = pred[C - NC:C, :]
    cls_per = jnp.sum((pred_cls - tcls) ** 2, axis=0, keepdims=True)
    cls_p = jnp.sum(jnp.where(obj, cls_per, 0.0), axis=1, keepdims=True)

    # no-object confidence loss
    noobj_p = jnp.zeros((1, 1), jnp.float32)
    for b in range(B):
        cb = pred[b * 5 + 4:b * 5 + 5, :]
        noobj_p = noobj_p + jnp.sum(jnp.where(obj, 0.0, cb * cb),
                                    axis=1, keepdims=True)

    # regression loss (raw x,y; sqrt on w,h as in the module; target sqrt
    # precomputed in the wrapper)
    t_xy = tgt_ref[G:G + 2, :]
    t_sq = tgt_ref[G + 2:G + 4, :]
    dxy = (best_box[0:2, :] - t_xy) ** 2
    dwh = (jnp.sqrt(best_box[2:4, :]) - t_sq) ** 2
    per = jnp.sum(dxy + dwh, axis=0, keepdims=True)
    reg_p = jnp.sum(jnp.where(obj, per, 0.0), axis=1, keepdims=True)

    # containing-object confidence loss
    cdiff = best_box[4:5, :] - best_ious
    contain_p = jnp.sum(jnp.where(obj, cdiff * cdiff, 0.0),
                        axis=1, keepdims=True)

    def rowify(x):                                          # (1,1) -> lane-dense row
        return jnp.broadcast_to(x, (1, 128))

    tile = jnp.concatenate(
        [rowify(cls_p), rowify(noobj_p), rowify(reg_p), rowify(contain_p),
         jnp.zeros((4, 128), jnp.float32)], axis=0)         # (8, 128)
    out_ref[...] = tile[None]                               # (1, 8, 128)


def yolo_loss_pallas(pred_tensor, target_boxes, target_cls, has_object_map, *,
                     S, B, l_coord, l_noobj,
                     target_tile=256, cand_chunk=32,
                     use_approx_recip=True,
                     vmem_limit_bytes=32 * 1024 * 1024):
    N = pred_tensor.shape[0]
    C = pred_tensor.shape[-1]
    NC = target_cls.shape[-1]
    M = N * S * S

    TN = int(target_tile)       # target cells per grid step (lanes), mult of 128
    CHUNK = int(cand_chunk)     # candidate cells per in-kernel chunk (sublanes)
    assert TN % 128 == 0 and CHUNK % 8 == 0

    num_i = -(-M // TN)
    Mp_t = num_i * TN
    Mp_c = -(-M // CHUNK) * CHUNK

    f32 = jnp.float32
    pred = pred_tensor.reshape(M, C).astype(f32)
    tb = target_boxes.reshape(M, 4).astype(f32)
    tc = target_cls.reshape(M, NC).astype(f32)
    mask = has_object_map.reshape(M).astype(f32)

    inv_S = np.float32(1.0 / S)

    # ---- target-side geometry, one cheap O(M) XLA pass ----------------------
    tx, ty, tw, th = tb[:, 0], tb[:, 1], tb[:, 2], tb[:, 3]
    txs, tys = tx * inv_S, ty * inv_S
    tx1, ty1 = txs - 0.5 * tw, tys - 0.5 * th
    tx2, ty2 = txs + 0.5 * tw, tys + 0.5 * th
    area_t = (tx2 - tx1) * (ty2 - ty1)
    geom = jnp.stack([tx, ty, jnp.sqrt(tw), jnp.sqrt(th),
                      tx1, ty1, tx2, ty2, area_t], axis=1)        # (M, 9)

    cell_feat = jnp.concatenate([pred, geom, tc, mask[:, None]], axis=1)
    CT = cell_feat.shape[1]                                        # C + 9 + NC + 1
    cell_feat = jnp.pad(cell_feat, ((0, Mp_t - M), (0, 0)))
    tgt = cell_feat.T                                              # (CT, Mp_t)

    # ---- candidate-side geometry, object cells compacted to the front -------
    cand_cols = []
    for b in range(B):
        px = pred[:, b * 5 + 0] * inv_S
        py = pred[:, b * 5 + 1] * inv_S
        pw = pred[:, b * 5 + 2]
        ph = pred[:, b * 5 + 3]
        px1, py1 = px - 0.5 * pw, py - 0.5 * ph
        px2, py2 = px + 0.5 * pw, py + 0.5 * ph
        area_p = (px2 - px1) * (py2 - py1)
        cand_cols += [px1, py1, px2, py2, area_p]
    cand_cols.append(mask)
    cand = jnp.stack(cand_cols, axis=1)                            # (M, 5B+1)

    order = jnp.argsort(1.0 - mask)                                # object cells first
    cand = jnp.pad(cand[order], ((0, Mp_c - M), (0, 0)))           # (Mp_c, 5B+1)

    n_obj = jnp.sum(mask).astype(jnp.int32)
    n_chunks = ((n_obj + CHUNK - 1) // CHUNK).astype(jnp.int32).reshape(1)

    kernel = functools.partial(_yolo_loss_kernel, B=B, NC=NC, C=C,
                               CHUNK=CHUNK, approx_recip=use_approx_recip)

    out = pl.pallas_call(
        kernel,
        out_shape=jax.ShapeDtypeStruct((num_i, 8, 128), f32),
        grid_spec=pltpu.PrefetchScalarGridSpec(
            num_scalar_prefetch=1,
            grid=(num_i,),
            in_specs=[
                # target slab: one (CT, TN) tile per grid step
                pl.BlockSpec((CT, TN), lambda i, n: (0, i)),
                # candidate slab: fully VMEM-resident (constant index map)
                pl.BlockSpec((Mp_c, 5 * B + 1), lambda i, n: (0, 0)),
            ],
            out_specs=pl.BlockSpec((1, 8, 128), lambda i, n: (i, 0, 0)),
            scratch_shapes=[pltpu.VMEM((B, TN), f32)],
        ),
        compiler_params=pltpu.CompilerParams(
            dimension_semantics=("parallel",),
            vmem_limit_bytes=vmem_limit_bytes),
    )(n_chunks, tgt, cand)

    parts = out[:, :4, 0]                     # (num_i, 4) per-row-tile partials
    cls_loss = jnp.sum(parts[:, 0])
    no_obj_loss = jnp.sum(parts[:, 1])
    reg_loss = jnp.sum(parts[:, 2])
    contain_loss = jnp.sum(parts[:, 3])
    total = cls_loss + l_coord * reg_loss + l_noobj * no_obj_loss + contain_loss
    return dict(total_loss=total, reg_loss=reg_loss,
                containing_obj_loss=contain_loss,
                no_obj_loss=no_obj_loss, cls_loss=cls_loss)


# ----------------------- pure-numpy reference (PyTorch semantics) ------------
def _ref_yolo_loss(pred, tbox, tcls, mask, S, B, l_coord, l_noobj):
    pred = np.asarray(pred, np.float32)
    tbox = np.asarray(tbox, np.float32)
    tcls = np.asarray(tcls, np.float32)
    mask = np.asarray(mask)

    pred_cls = pred[..., -3:]
    cls_loss = np.sum(mask.astype(np.float32)
                      * np.sum((pred_cls - tcls) ** 2, axis=-1))

    pred_boxes_list = [pred[..., i * 5:(i + 1) * 5] for i in range(B)]
    no_obj = 0.0
    for pb in pred_boxes_list:
        no_obj += np.sum((pb[..., 4] * (1.0 - mask.astype(np.float32))) ** 2)

    m = mask.reshape(-1).astype(bool)
    pbs = [pb.reshape(-1, 5)[m] for pb in pred_boxes_list]
    tb = tbox.reshape(-1, 4)[m]

    def xyxy(b):
        r = np.zeros_like(b[:, :4])
        r[:, 0] = b[:, 0] / S - 0.5 * b[:, 2]
        r[:, 1] = b[:, 1] / S - 0.5 * b[:, 3]
        r[:, 2] = b[:, 0] / S + 0.5 * b[:, 2]
        r[:, 3] = b[:, 1] / S + 0.5 * b[:, 3]
        return r

    def iou(b1, b2):
        lt = np.maximum(b1[:, None, :2], b2[None, :, :2])
        rb = np.minimum(b1[:, None, 2:], b2[None, :, 2:])
        wh = np.clip(rb - lt, 0.0, None)
        inter = wh[..., 0] * wh[..., 1]
        a1 = (b1[:, 2] - b1[:, 0]) * (b1[:, 3] - b1[:, 1])
        a2 = (b2[:, 2] - b2[:, 0]) * (b2[:, 3] - b2[:, 1])
        return inter / (a1[:, None] + a2[None, :] - inter)

    t_xyxy = xyxy(tb)
    pot = np.stack([iou(xyxy(pbs[b][:, :4]), t_xyxy).max(axis=0)
                    for b in range(B)], axis=0)
    idx = np.argmax(pot, axis=0)
    best_ious = pot.max(axis=0)
    stacked = np.stack(pbs, axis=0)
    best_boxes = stacked[idx, np.arange(stacked.shape[1]), :]

    reg = (np.sum((best_boxes[:, 0:2] - tb[:, 0:2]) ** 2)
           + np.sum((np.sqrt(best_boxes[:, 2:4]) - np.sqrt(tb[:, 2:4])) ** 2))
    contain = np.sum((best_boxes[:, 4] - best_ious) ** 2)
    total = cls_loss + l_coord * reg + l_noobj * no_obj + contain
    return dict(total_loss=total, reg_loss=reg, containing_obj_loss=contain,
                no_obj_loss=no_obj, cls_loss=cls_loss)


if __name__ == "__main__":
    S, B = 12, 2
    NC = 3                       # the module slices the last 3 channels as classes
    C = B * 5 + NC               # 13
    N = 2
    l_coord, l_noobj = 5.0, 0.5

    key = jax.random.PRNGKey(0)
    k1, k2, k3, k4 = jax.random.split(key, 4)
    pred_tensor = jax.random.uniform(k1, (N, S, S, C), jnp.float32,
                                     minval=0.05, maxval=1.0)
    target_boxes = jax.random.uniform(k2, (N, S, S, 4), jnp.float32,
                                      minval=0.05, maxval=1.0)
    target_cls = jax.random.uniform(k3, (N, S, S, NC), jnp.float32)
    has_object_map = jax.random.uniform(k4, (N, S, S)) > 0.5

    # Small tiles so the test exercises multiple target-row tiles AND multiple
    # in-kernel candidate chunks: M = 288 -> num_i = 3, ~5 candidate chunks.
    loss_dict = yolo_loss_pallas(pred_tensor, target_boxes, target_cls,
                                 has_object_map, S=S, B=B,
                                 l_coord=l_coord, l_noobj=l_noobj,
                                 target_tile=128, cand_chunk=32)
    loss_dict = jax.tree_util.tree_map(jax.block_until_ready, loss_dict)

    ref = _ref_yolo_loss(np.asarray(pred_tensor), np.asarray(target_boxes),
                         np.asarray(target_cls), np.asarray(has_object_map),
                         S, B, l_coord, l_noobj)

    for name in ("total_loss", "reg_loss", "containing_obj_loss",
                 "no_obj_loss", "cls_loss"):
        got = float(loss_dict[name])
        want = float(ref[name])
        assert np.allclose(got, want, rtol=1e-4, atol=1e-4), \
            f"{name}: pallas={got} ref={want}"

    print("KERNEL_OK")
</pallas_src>

<mosaic_0001>
module attributes {stable_mosaic.version = 11 : i64} {
  func.func @_yolo_loss_kernel(%arg0: i32, %arg1: memref<1xi32, #tpu.memory_space<smem>>, %arg2: memref<26x128xf32, #tpu.memory_space<vmem>>, %arg3: memref<288x11xf32, #tpu.memory_space<vmem>>, %arg4: memref<1x8x128xf32, #tpu.memory_space<vmem>>, %arg5: memref<2x128xf32, #tpu.memory_space<vmem>>) attributes {dimension_semantics = [#tpu.dimension_semantics<parallel>], iteration_bounds = array<i64: 3>, scalar_prefetch = 1 : i64, scratch_operands = 1 : i64, tpu.core_type = #tpu.core_type<tc>, window_params = [{transform_indices = @transform_0, window_bounds = array<i64: 26, 128>}, {pipeline_mode = #tpu.pipeline_mode<synchronous>, transform_indices = @transform_1, window_bounds = array<i64: 288, 11>}, {transform_indices = @transform_2, window_bounds = array<i64: 1, 8, 128>}]} {
    %c17 = arith.constant 17 : index
    %c0 = arith.constant 0 : index
    %0 = vector.load %arg2[%c17, %c0] : memref<26x128xf32, #tpu.memory_space<vmem>>, vector<1x128xf32>
    %c18 = arith.constant 18 : index
    %c0_0 = arith.constant 0 : index
    %1 = vector.load %arg2[%c18, %c0_0] : memref<26x128xf32, #tpu.memory_space<vmem>>, vector<1x128xf32>
    %c19 = arith.constant 19 : index
    %c0_1 = arith.constant 0 : index
    %2 = vector.load %arg2[%c19, %c0_1] : memref<26x128xf32, #tpu.memory_space<vmem>>, vector<1x128xf32>
    %c20 = arith.constant 20 : index
    %c0_2 = arith.constant 0 : index
    %3 = vector.load %arg2[%c20, %c0_2] : memref<26x128xf32, #tpu.memory_space<vmem>>, vector<1x128xf32>
    %c21 = arith.constant 21 : index
    %c0_3 = arith.constant 0 : index
    %4 = vector.load %arg2[%c21, %c0_3] : memref<26x128xf32, #tpu.memory_space<vmem>>, vector<1x128xf32>
    %cst = arith.constant -1.000000e+30 : f32
    %5 = vector.broadcast %cst : f32 to vector<2x128xf32>
    %c0_4 = arith.constant 0 : index
    %c0_5 = arith.constant 0 : index
    %6 = vector.load %arg5[%c0_4, %c0_5] : memref<2x128xf32, #tpu.memory_space<vmem>>, vector<2x128xf32>
    tpu.vector_store %arg5[%c0_4, %c0_5], %5 {strides = array<i32>} : memref<2x128xf32, #tpu.memory_space<vmem>>, vector<2x128xf32>,
    %c0_6 = arith.constant 0 : index
    %7 = memref.load %arg1[%c0_6] : memref<1xi32, #tpu.memory_space<smem>>
    %c0_i32 = arith.constant 0 : i32
    %8 = arith.subi %7, %c0_i32 : i32
    %c1_i32 = arith.constant 1 : i32
    %c1_i32_7 = arith.constant 1 : i32
    %9 = arith.subi %c1_i32, %c1_i32_7 : i32
    %10 = arith.addi %8, %9 : i32
    %c1_i32_8 = arith.constant 1 : i32
    %11 = arith.divsi %10, %c1_i32_8 : i32
    %c1_i32_9 = arith.constant 1 : i32
    %c0_i32_10 = arith.constant 0 : i32
    %cst_11 = arith.constant -1.000000e+30 : f32
    %c0_i32_12 = arith.constant 0 : i32
    %12 = arith.subi %11, %c0_i32_12 : i32
    %13 = arith.addi %c0_i32_12, %12 : i32
    %c1_i32_13 = arith.constant 1 : i32
    scf.for %arg6 = %c0_i32_12 to %13 step %c1_i32_13  : i32 {
      %100 = arith.muli %arg6, %c1_i32_9 : i32
      %101 = arith.addi %c0_i32_10, %100 : i32
      %c32_i32 = arith.constant 32 : i32
      %102 = arith.muli %101, %c32_i32 : i32
      %103 = tpu.assume_multiple %102, 32 : i32
      %104 = arith.index_cast %103 : i32 to index
      %c0_44 = arith.constant 0 : index
      %105 = vector.load %arg3[%104, %c0_44] : memref<288x11xf32, #tpu.memory_space<vmem>>, vector<32x11xf32>
      %106 = vector.extract_strided_slice %105 {offsets = [0, 10], sizes = [32, 1], strides = [1, 1]} : vector<32x11xf32> to vector<32x1xf32>
      %cst_45 = arith.constant 0.000000e+00 : f32
      %107 = vector.broadcast %cst_45 : f32 to vector<32x1xf32>
      %108 = arith.cmpf ogt, %106, %107 : vector<32x1xf32>
      %109 = vector.extract_strided_slice %105 {offsets = [0, 0], sizes = [32, 1], strides = [1, 1]} : vector<32x11xf32> to vector<32x1xf32>
      %110 = vector.extract_strided_slice %105 {offsets = [0, 1], sizes = [32, 1], strides = [1, 1]} : vector<32x11xf32> to vector<32x1xf32>
      %111 = vector.extract_strided_slice %105 {offsets = [0, 2], sizes = [32, 1], strides = [1, 1]} : vector<32x11xf32> to vector<32x1xf32>
      %112 = vector.extract_strided_slice %105 {offsets = [0, 3], sizes = [32, 1], strides = [1, 1]} : vector<32x11xf32> to vector<32x1xf32>
      %113 = vector.extract_strided_slice %105 {offsets = [0, 4], sizes = [32, 1], strides = [1, 1]} : vector<32x11xf32> to vector<32x1xf32>
      %114 = vector.broadcast %111 : vector<32x1xf32> to vector<32x128xf32>
      %115 = vector.broadcast %2 : vector<1x128xf32> to vector<32x128xf32>
      %116 = arith.minimumf %114, %115 : vector<32x128xf32>
      %117 = vector.broadcast %109 : vector<32x1xf32> to vector<32x128xf32>
      %118 = vector.broadcast %0 : vector<1x128xf32> to vector<32x128xf32>
      %119 = arith.maximumf %117, %118 : vector<32x128xf32>
      %120 = arith.subf %116, %119 : vector<32x128xf32>
      %cst_46 = arith.constant 0.000000e+00 : f32
      %121 = vector.broadcast %cst_46 : f32 to vector<32x128xf32>
      %122 = arith.maximumf %120, %121 : vector<32x128xf32>
      %123 = vector.broadcast %112 : vector<32x1xf32> to vector<32x128xf32>
      %124 = vector.broadcast %3 : vector<1x128xf32> to vector<32x128xf32>
      %125 = arith.minimumf %123, %124 : vector<32x128xf32>
      %126 = vector.broadcast %110 : vector<32x1xf32> to vector<32x128xf32>
      %127 = vector.broadcast %1 : vector<1x128xf32> to vector<32x128xf32>
      %128 = arith.maximumf %126, %127 : vector<32x128xf32>
      %129 = arith.subf %125, %128 : vector<32x128xf32>
      %cst_47 = arith.constant 0.000000e+00 : f32
      %130 = vector.broadcast %cst_47 : f32 to vector<32x128xf32>
      %131 = arith.maximumf %129, %130 : vector<32x128xf32>
      %132 = arith.mulf %122, %131 : vector<32x128xf32>
      %133 = vector.broadcast %113 : vector<32x1xf32> to vector<32x128xf32>
      %134 = vector.broadcast %4 : vector<1x128xf32> to vector<32x128xf32>
      %135 = arith.addf %133, %134 : vector<32x128xf32>
      %136 = arith.subf %135, %132 : vector<32x128xf32>
      %137 = tpu.reciprocal %136 {approx = true} : vector<32x128xf32> -> vector<32x128xf32>
      %138 = arith.mulf %136, %137 : vector<32x128xf32>
      %cst_48 = arith.constant 2.000000e+00 : f32
      %139 = vector.broadcast %cst_48 : f32 to vector<32x128xf32>
      %140 = arith.subf %139, %138 : vector<32x128xf32>
      %141 = arith.mulf %137, %140 : vector<32x128xf32>
      %142 = arith.mulf %132, %141 : vector<32x128xf32>
      %143 = vector.shape_cast %108 : vector<32x1xi1> to vector<32x1xi1>
      %144 = vector.broadcast %143 : vector<32x1xi1> to vector<32x128xi1>
      %145 = vector.broadcast %cst_11 : f32 to vector<32x128xf32>
      %146 = arith.select %144, %142, %145 : vector<32x128xi1>, vector<32x128xf32>
      %cst_49 = arith.constant dense<0xFF800000> : vector<128xf32>
      %147 = vector.multi_reduction <maximumf>, %146, %cst_49 [0] : vector<32x128xf32> to vector<128xf32>
      %148 = vector.shape_cast %147 : vector<128xf32> to vector<1x128xf32>
      %c0_50 = arith.constant 0 : index
      %c0_51 = arith.constant 0 : index
      %149 = vector.load %arg5[%c0_50, %c0_51] : memref<2x128xf32, #tpu.memory_space<vmem>>, vector<1x128xf32>
      %150 = arith.maximumf %149, %148 : vector<1x128xf32>
      %c0_52 = arith.constant 0 : index
      %c0_53 = arith.constant 0 : index
      %151 = vector.load %arg5[%c0_52, %c0_53] : memref<2x128xf32, #tpu.memory_space<vmem>>, vector<1x128xf32>
      tpu.vector_store %arg5[%c0_52, %c0_53], %150 {strides = array<i32>} : memref<2x128xf32, #tpu.memory_space<vmem>>, vector<1x128xf32>,
      %152 = vector.extract_strided_slice %105 {offsets = [0, 5], sizes = [32, 1], strides = [1, 1]} : vector<32x11xf32> to vector<32x1xf32>
      %153 = vector.extract_strided_slice %105 {offsets = [0, 6], sizes = [32, 1], strides = [1, 1]} : vector<32x11xf32> to vector<32x1xf32>
      %154 = vector.extract_strided_slice %105 {offsets = [0, 7], sizes = [32, 1], strides = [1, 1]} : vector<32x11xf32> to vector<32x1xf32>
      %155 = vector.extract_strided_slice %105 {offsets = [0, 8], sizes = [32, 1], strides = [1, 1]} : vector<32x11xf32> to vector<32x1xf32>
      %156 = vector.extract_strided_slice %105 {offsets = [0, 9], sizes = [32, 1], strides = [1, 1]} : vector<32x11xf32> to vector<32x1xf32>
      %157 = vector.broadcast %154 : vector<32x1xf32> to vector<32x128xf32>
      %158 = vector.broadcast %2 : vector<1x128xf32> to vector<32x128xf32>
      %159 = arith.minimumf %157, %158 : vector<32x128xf32>
      %160 = vector.broadcast %152 : vector<32x1xf32> to vector<32x128xf32>
      %161 = vector.broadcast %0 : vector<1x128xf32> to vector<32x128xf32>
      %162 = arith.maximumf %160, %161 : vector<32x128xf32>
      %163 = arith.subf %159, %162 : vector<32x128xf32>
      %cst_54 = arith.constant 0.000000e+00 : f32
      %164 = vector.broadcast %cst_54 : f32 to vector<32x128xf32>
      %165 = arith.maximumf %163, %164 : vector<32x128xf32>
      %166 = vector.broadcast %155 : vector<32x1xf32> to vector<32x128xf32>
      %167 = vector.broadcast %3 : vector<1x128xf32> to vector<32x128xf32>
      %168 = arith.minimumf %166, %167 : vector<32x128xf32>
      %169 = vector.broadcast %153 : vector<32x1xf32> to vector<32x128xf32>
      %170 = vector.broadcast %1 : vector<1x128xf32> to vector<32x128xf32>
      %171 = arith.maximumf %169, %170 : vector<32x128xf32>
      %172 = arith.subf %168, %171 : vector<32x128xf32>
      %cst_55 = arith.constant 0.000000e+00 : f32
      %173 = vector.broadcast %cst_55 : f32 to vector<32x128xf32>
      %174 = arith.maximumf %172, %173 : vector<32x128xf32>
      %175 = arith.mulf %165, %174 : vector<32x128xf32>
      %176 = vector.broadcast %156 : vector<32x1xf32> to vector<32x128xf32>
      %177 = vector.broadcast %4 : vector<1x128xf32> to vector<32x128xf32>
      %178 = arith.addf %176, %177 : vector<32x128xf32>
      %179 = arith.subf %178, %175 : vector<32x128xf32>
      %180 = tpu.reciprocal %179 {approx = true} : vector<32x128xf32> -> vector<32x128xf32>
      %181 = arith.mulf %179, %180 : vector<32x128xf32>
      %cst_56 = arith.constant 2.000000e+00 : f32
      %182 = vector.broadcast %cst_56 : f32 to vector<32x128xf32>
      %183 = arith.subf %182, %181 : vector<32x128xf32>
      %184 = arith.mulf %180, %183 : vector<32x128xf32>
      %185 = arith.mulf %175, %184 : vector<32x128xf32>
      %186 = vector.shape_cast %108 : vector<32x1xi1> to vector<32x1xi1>
      %187 = vector.broadcast %186 : vector<32x1xi1> to vector<32x128xi1>
      %188 = vector.broadcast %cst_11 : f32 to vector<32x128xf32>
      %189 = arith.select %187, %185, %188 : vector<32x128xi1>, vector<32x128xf32>
      %cst_57 = arith.constant dense<0xFF800000> : vector<128xf32>
      %190 = vector.multi_reduction <maximumf>, %189, %cst_57 [0] : vector<32x128xf32> to vector<128xf32>
      %191 = vector.shape_cast %190 : vector<128xf32> to vector<1x128xf32>
      %c1 = arith.constant 1 : index
      %c0_58 = arith.constant 0 : index
      %192 = vector.load %arg5[%c1, %c0_58] : memref<2x128xf32, #tpu.memory_space<vmem>>, vector<1x128xf32>
      %193 = arith.maximumf %192, %191 : vector<1x128xf32>
      %c1_59 = arith.constant 1 : index
      %c0_60 = arith.constant 0 : index
      %194 = vector.load %arg5[%c1_59, %c0_60] : memref<2x128xf32, #tpu.memory_space<vmem>>, vector<1x128xf32>
      tpu.vector_store %arg5[%c1_59, %c0_60], %193 {strides = array<i32>} : memref<2x128xf32, #tpu.memory_space<vmem>>, vector<1x128xf32>,
    }
    %c0_14 = arith.constant 0 : index
    %c0_15 = arith.constant 0 : index
    %14 = vector.load %arg5[%c0_14, %c0_15] : memref<2x128xf32, #tpu.memory_space<vmem>>, vector<2x128xf32>
    %cst_16 = arith.constant dense<0xFF800000> : vector<128xf32>
    %15 = vector.multi_reduction <maximumf>, %14, %cst_16 [0] : vector<2x128xf32> to vector<128xf32>
    %16 = vector.shape_cast %15 : vector<128xf32> to vector<1x128xf32>
    %c0_17 = arith.constant 0 : index
    %c0_18 = arith.constant 0 : index
    %17 = vector.load %arg2[%c0_17, %c0_18] : memref<26x128xf32, #tpu.memory_space<vmem>>, vector<13x128xf32>
    %c25 = arith.constant 25 : index
    %c0_19 = arith.constant 0 : index
    %18 = vector.load %arg2[%c25, %c0_19] : memref<26x128xf32, #tpu.memory_space<vmem>>, vector<1x128xf32>
    %cst_20 = arith.constant 0.000000e+00 : f32
    %19 = vector.broadcast %cst_20 : f32 to vector<1x128xf32>
    %20 = arith.cmpf ogt, %18, %19 : vector<1x128xf32>
    %cst_21 = arith.constant 0.000000e+00 : f32
    %21 = vector.broadcast %cst_21 : f32 to vector<5x128xf32>
    %false = arith.constant false
    %22 = vector.broadcast %false : i1 to vector<1x128xi1>
    %23 = vector.extract_strided_slice %14 {offsets = [0, 0], sizes = [1, 128], strides = [1, 1]} : vector<2x128xf32> to vector<1x128xf32>
    %24 = arith.cmpf oge, %23, %16 : vector<1x128xf32>
    %cst_22 = arith.constant dense<true> : vector<1x128xi1>
    %25 = arith.xori %22, %cst_22 : vector<1x128xi1>
    %26 = arith.andi %24, %25 : vector<1x128xi1>
    %27 = vector.extract_strided_slice %17 {offsets = [0, 0], sizes = [5, 128], strides = [1, 1]} : vector<13x128xf32> to vector<5x128xf32>
    %28 = vector.shape_cast %26 : vector<1x128xi1> to vector<1x128xi1>
    %29 = vector.broadcast %28 : vector<1x128xi1> to vector<5x128xi1>
    %30 = arith.select %29, %27, %21 : vector<5x128xi1>, vector<5x128xf32>
    %31 = arith.ori %22, %26 : vector<1x128xi1>
    %32 = vector.extract_strided_slice %14 {offsets = [1, 0], sizes = [1, 128], strides = [1, 1]} : vector<2x128xf32> to vector<1x128xf32>
    %33 = arith.cmpf oge, %32, %16 : vector<1x128xf32>
    %cst_23 = arith.constant dense<true> : vector<1x128xi1>
    %34 = arith.xori %31, %cst_23 : vector<1x128xi1>
    %35 = arith.andi %33, %34 : vector<1x128xi1>
    %36 = vector.extract_strided_slice %17 {offsets = [5, 0], sizes = [5, 128], strides = [1, 1]} : vector<13x128xf32> to vector<5x128xf32>
    %37 = vector.shape_cast %35 : vector<1x128xi1> to vector<1x128xi1>
    %38 = vector.broadcast %37 : vector<1x128xi1> to vector<5x128xi1>
    %39 = arith.select %38, %36, %30 : vector<5x128xi1>, vector<5x128xf32>
    %c22 = arith.constant 22 : index
    %c0_24 = arith.constant 0 : index
    %40 = vector.load %arg2[%c22, %c0_24] : memref<26x128xf32, #tpu.memory_space<vmem>>, vector<3x128xf32>
    %41 = vector.extract_strided_slice %17 {offsets = [10, 0], sizes = [3, 128], strides = [1, 1]} : vector<13x128xf32> to vector<3x128xf32>
    %42 = arith.subf %41, %40 : vector<3x128xf32>
    %43 = arith.mulf %42, %42 : vector<3x128xf32>
    %cst_25 = arith.constant dense<0.000000e+00> : vector<128xf32>
    %44 = vector.multi_reduction <add>, %43, %cst_25 [0] : vector<3x128xf32> to vector<128xf32>
    %45 = vector.shape_cast %44 : vector<128xf32> to vector<1x128xf32>
    %cst_26 = arith.constant 0.000000e+00 : f32
    %46 = vector.broadcast %cst_26 : f32 to vector<1x128xf32>
    %47 = arith.select %20, %45, %46 : vector<1x128xi1>, vector<1x128xf32>
    %cst_27 = arith.constant dense<0.000000e+00> : vector<1xf32>
    %48 = vector.multi_reduction <add>, %47, %cst_27 [1] : vector<1x128xf32> to vector<1xf32>
    %49 = vector.shape_cast %48 : vector<1xf32> to vector<1x1xf32>
    %cst_28 = arith.constant 0.000000e+00 : f32
    %50 = vector.broadcast %cst_28 : f32 to vector<1x1xf32>
    %51 = vector.extract_strided_slice %17 {offsets = [4, 0], sizes = [1, 128], strides = [1, 1]} : vector<13x128xf32> to vector<1x128xf32>
    %52 = arith.mulf %51, %51 : vector<1x128xf32>
    %cst_29 = arith.constant 0.000000e+00 : f32
    %53 = vector.broadcast %cst_29 : f32 to vector<1x128xf32>
    %54 = arith.select %20, %53, %52 : vector<1x128xi1>, vector<1x128xf32>
    %cst_30 = arith.constant dense<0.000000e+00> : vector<1xf32>
    %55 = vector.multi_reduction <add>, %54, %cst_30 [1] : vector<1x128xf32> to vector<1xf32>
    %56 = vector.shape_cast %55 : vector<1xf32> to vector<1x1xf32>
    %57 = arith.addf %50, %56 : vector<1x1xf32>
    %58 = vector.extract_strided_slice %17 {offsets = [9, 0], sizes = [1, 128], strides = [1, 1]} : vector<13x128xf32> to vector<1x128xf32>
    %59 = arith.mulf %58, %58 : vector<1x128xf32>
    %cst_31 = arith.constant 0.000000e+00 : f32
    %60 = vector.broadcast %cst_31 : f32 to vector<1x128xf32>
    %61 = arith.select %20, %60, %59 : vector<1x128xi1>, vector<1x128xf32>
    %cst_32 = arith.constant dense<0.000000e+00> : vector<1xf32>
    %62 = vector.multi_reduction <add>, %61, %cst_32 [1] : vector<1x128xf32> to vector<1xf32>
    %63 = vector.shape_cast %62 : vector<1xf32> to vector<1x1xf32>
    %64 = arith.addf %57, %63 : vector<1x1xf32>
    %c13 = arith.constant 13 : index
    %c0_33 = arith.constant 0 : index
    %65 = vector.load %arg2[%c13, %c0_33] : memref<26x128xf32, #tpu.memory_space<vmem>>, vector<2x128xf32>
    %c15 = arith.constant 15 : index
    %c0_34 = arith.constant 0 : index
    %66 = vector.load %arg2[%c15, %c0_34] : memref<26x128xf32, #tpu.memory_space<vmem>>, vector<2x128xf32>
    %67 = vector.extract_strided_slice %39 {offsets = [0, 0], sizes = [2, 128], strides = [1, 1]} : vector<5x128xf32> to vector<2x128xf32>
    %68 = arith.subf %67, %65 : vector<2x128xf32>
    %69 = arith.mulf %68, %68 : vector<2x128xf32>
    %70 = vector.extract_strided_slice %39 {offsets = [2, 0], sizes = [2, 128], strides = [1, 1]} : vector<5x128xf32> to vector<2x128xf32>
    %71 = math.sqrt %70 : vector<2x128xf32>
    %72 = arith.subf %71, %66 : vector<2x128xf32>
    %73 = arith.mulf %72, %72 : vector<2x128xf32>
    %74 = arith.addf %69, %73 : vector<2x128xf32>
    %cst_35 = arith.constant dense<0.000000e+00> : vector<128xf32>
    %75 = vector.multi_reduction <add>, %74, %cst_35 [0] : vector<2x128xf32> to vector<128xf32>
    %76 = vector.shape_cast %75 : vector<128xf32> to vector<1x128xf32>
    %cst_36 = arith.constant 0.000000e+00 : f32
    %77 = vector.broadcast %cst_36 : f32 to vector<1x128xf32>
    %78 = arith.select %20, %76, %77 : vector<1x128xi1>, vector<1x128xf32>
    %cst_37 = arith.constant dense<0.000000e+00> : vector<1xf32>
    %79 = vector.multi_reduction <add>, %78, %cst_37 [1] : vector<1x128xf32> to vector<1xf32>
    %80 = vector.shape_cast %79 : vector<1xf32> to vector<1x1xf32>
    %81 = vector.extract_strided_slice %39 {offsets = [4, 0], sizes = [1, 128], strides = [1, 1]} : vector<5x128xf32> to vector<1x128xf32>
    %82 = arith.subf %81, %16 : vector<1x128xf32>
    %83 = arith.mulf %82, %82 : vector<1x128xf32>
    %cst_38 = arith.constant 0.000000e+00 : f32
    %84 = vector.broadcast %cst_38 : f32 to vector<1x128xf32>
    %85 = arith.select %20, %83, %84 : vector<1x128xi1>, vector<1x128xf32>
    %cst_39 = arith.constant dense<0.000000e+00> : vector<1xf32>
    %86 = vector.multi_reduction <add>, %85, %cst_39 [1] : vector<1x128xf32> to vector<1xf32>
    %87 = vector.shape_cast %86 : vector<1xf32> to vector<1x1xf32>
    %88 = vector.shape_cast %49 : vector<1x1xf32> to vector<1x1xf32>
    %89 = vector.broadcast %88 : vector<1x1xf32> to vector<1x128xf32>
    %90 = vector.shape_cast %64 : vector<1x1xf32> to vector<1x1xf32>
    %91 = vector.broadcast %90 : vector<1x1xf32> to vector<1x128xf32>
    %92 = vector.shape_cast %80 : vector<1x1xf32> to vector<1x1xf32>
    %93 = vector.broadcast %92 : vector<1x1xf32> to vector<1x128xf32>
    %94 = vector.shape_cast %87 : vector<1x1xf32> to vector<1x1xf32>
    %95 = vector.broadcast %94 : vector<1x1xf32> to vector<1x128xf32>
    %cst_40 = arith.constant 0.000000e+00 : f32
    %96 = vector.broadcast %cst_40 : f32 to vector<4x128xf32>
    %97 = tpu.concatenate %89, %91, %93, %95, %96 in 0 : vector<1x128xf32>, vector<1x128xf32>, vector<1x128xf32>, vector<1x128xf32>, vector<4x128xf32> -> vector<8x128xf32>
    %98 = vector.shape_cast %97 : vector<8x128xf32> to vector<1x8x128xf32>
    %c0_41 = arith.constant 0 : index
    %c0_42 = arith.constant 0 : index
    %c0_43 = arith.constant 0 : index
    %99 = vector.load %arg4[%c0_41, %c0_42, %c0_43] : memref<1x8x128xf32, #tpu.memory_space<vmem>>, vector<1x8x128xf32>
    tpu.vector_store %arg4[%c0_41, %c0_42, %c0_43], %98 {strides = array<i32>} : memref<1x8x128xf32, #tpu.memory_space<vmem>>, vector<1x8x128xf32>,
    return
  }
  func.func @transform_0(%arg0: i32, %arg1: memref<1xi32, #tpu.memory_space<smem>>) -> (i32, i32) {
    %c0_i32 = arith.constant 0 : i32
    %c0_i32_0 = arith.constant 0 : i32
    return %c0_i32, %arg0 : i32, i32
  }
  func.func @transform_1(%arg0: i32, %arg1: memref<1xi32, #tpu.memory_space<smem>>) -> (i32, i32) {
    %c0_i32 = arith.constant 0 : i32
    %c0_i32_0 = arith.constant 0 : i32
    %c0_i32_1 = arith.constant 0 : i32
    return %c0_i32, %c0_i32_0 : i32, i32
  }
  func.func @transform_2(%arg0: i32, %arg1: memref<1xi32, #tpu.memory_space<smem>>) -> (i32, i32, i32) {
    %c0_i32 = arith.constant 0 : i32
    %c0_i32_0 = arith.constant 0 : i32
    %c0_i32_1 = arith.constant 0 : i32
    return %arg0, %c0_i32, %c0_i32_0 : i32, i32, i32
  }
}

</mosaic_0001>

<llo_original>
// kernel: tpu_custom_call.1
$region0: #{tpu_custom_call.1}
  #allocation0 [shape = 'u32[]', space=smem, size = 0x4, offset = 0x4, fixed_abs, tag = 'smem constant byte address 0x4 - core index']
  #allocation1 [shape = 'u32[144,128]{1,0:T(1,128)}', space=vmem, size = 0x12000, scoped, tag = 'internal scratch']
  #allocation2 [shape = 'f32[2,128]{1,0:T(2,128)}', space=vmem, size = 0x400, scoped, tag = 'scratch operand']
  #allocation3 [shape = 's32[1]{0}', space=sflag, size = 0x4, scoped, tag = 'scoped memory for tpu_custom_call.1']
  #allocation4 [shape = 's32[1]{0:T(128)S(6)}', space=smem, size = 0x200, scoped, tag = 'prefetched SMEM operand 0']
  %s0 = inlined_call_operand.<no memory space> [shape: s32[1], index: 0, kind: input, shape index: {}]
  %s1 = inlined_call_operand.vmem [shape: f32[26,384], index: 1, kind: input, shape index: {}]
  %s2 = inlined_call_operand.vmem [shape: f32[288,11], index: 2, kind: input, shape index: {}]
  %s3 = inlined_call_operand.hbm [shape: f32[3,8,128], index: 3, kind: output, shape index: {}]
  %s4 = sld [smem:[#allocation0]]
  $region86: #{tpu_custom_call.1} parent=0
    _
  %s6 = ssub.s32 1, %s4
  %s7 = scalar_select 0, %s6, %s4
  %8 = sst [smem:[#allocation4]] %s0
  $region1: #{tpu_custom_call.1} parent=0
    #allocation5 [shape = 'u8[32768]{0}', space=vmem, size = 0x8000, scoped, tag = 'input window, operand 1']
    #allocation6 [shape = 'u8[8192]{0}', space=vmem, size = 0x2000, scoped, tag = 'output window, operand 0']
    #allocation7 [shape = 's32[2]{0}', space=sflag, size = 0x8, scoped, tag = 'scoped memory for tpu_custom_call.1']
    %9 = vsyncpa [#allocation7], 0
    %s10 = scalar_lea.sflag [#allocation7], 1
    %11 = vsyncpa %s10, 0
    loop: start=0, step=1, limit=5
    $region2: #{tpu_custom_call.1} parent=1 // loop_pre_header
      _
    $region3: #{tpu_custom_call.1} parent=1 // loop_header
      %s13 = sphi 0, %s17
      %p14 = scmp.ge.s32.totalorder %s13, 5
      %s23 = sphi 0, %s25
      %s26 = sphi 0, %s23
      %s27 = sphi 0, %s26
      %s43 = sphi 0, %s27
      %s47 = sphi 0, %s47
      %s49 = sphi 0, %s47
      %s50 = sphi 0, %s49
      %s64 = sphi 0, %s50
      %s70 = sphi 0, %s72
      %s73 = sphi 0, %s70
      %s74 = sphi 0, %s73
      %s90 = sphi 0, %s74
    $region4: #{tpu_custom_call.1} parent=1 // loop_header_branch
      %16 = sbr.rel (%p14) target = $region8
    $region5: #{tpu_custom_call.1} parent=1 // loop_body
      %s18 = ssub.s32 %s13, 1
      %s19 = ssub.s32 %s13, 2
      %s20 = sadd.s32 %s13, 1
      %s21 = ssub.s32 %s13, %s20
      %p22 = scmp.eq.s32.totalorder %s21, 0
      %s24 = sadd.s32 %s23, 1
      %s25 = scalar_select %p22, %s23, %s24
      %p28 = pneg %p22
      %p29 = scmp.eq.s32.totalorder %s13, 2
      %p30 = por %p28, %p29
      %p31 = scmp.ne.s32.totalorder %s23, %s26
      %p32 = scmp.eq.s32.totalorder %s13, 0
      %p33 = por %p31, %p32
      %p34 = scmp.ne.s32.totalorder %s23, %s26
      %p35 = scmp.eq.s32.totalorder %s18, 2
      %p36 = por %p34, %p35
      %p37 = scmp.ne.s32.totalorder %s26, %s27
      %p38 = scmp.eq.s32.totalorder %s18, 0
      %p39 = por %p37, %p38
      %p40 = scmp.ne.s32.totalorder %s26, %s27
      %p41 = scmp.eq.s32.totalorder %s19, 2
      %p42 = por %p40, %p41
      %p44 = scmp.ne.s32.totalorder %s27, %s43
      %p45 = scmp.eq.s32.totalorder %s19, 0
      %p46 = por %p44, %p45
      %s48 = sadd.s32 %s47, 1
      %p51 = scmp.eq.s32.totalorder %s13, 2
      %p52 = scmp.ne.s32.totalorder %s47, %s49
      %p53 = scmp.eq.s32.totalorder %s13, 0
      %p54 = por %p52, %p53
      %p55 = scmp.ne.s32.totalorder %s47, %s49
      %p56 = scmp.eq.s32.totalorder %s18, 2
      %p57 = por %p55, %p56
      %p58 = scmp.ne.s32.totalorder %s49, %s50
      %p59 = scmp.eq.s32.totalorder %s18, 0
      %p60 = por %p58, %p59
      %p61 = scmp.ne.s32.totalorder %s49, %s50
      %p62 = scmp.eq.s32.totalorder %s19, 2
      %p63 = por %p61, %p62
      %p65 = scmp.ne.s32.totalorder %s50, %s64
      %p66 = scmp.eq.s32.totalorder %s19, 0
      %p67 = por %p65, %p66
      %s68 = ssub.s32 %s13, %s20
      %p69 = scmp.eq.s32.totalorder %s68, 0
      %s71 = sadd.s32 %s70, 1
      %s72 = scalar_select %p69, %s70, %s71
      %p75 = pneg %p69
      %p76 = scmp.eq.s32.totalorder %s13, 2
      %p77 = por %p75, %p76
      %p78 = scmp.ne.s32.totalorder %s70, %s73
      %p79 = scmp.eq.s32.totalorder %s13, 0
      %p80 = por %p78, %p79
      %p81 = scmp.ne.s32.totalorder %s70, %s73
      %p82 = scmp.eq.s32.totalorder %s18, 2
      %p83 = por %p81, %p82
      %p84 = scmp.ne.s32.totalorder %s73, %s74
      %p85 = scmp.eq.s32.totalorder %s18, 0
      %p86 = por %p84, %p85
      %p87 = scmp.ne.s32.totalorder %s73, %s74
      %p88 = scmp.eq.s32.totalorder %s19, 2
      %p89 = por %p87, %p88
      %p91 = scmp.ne.s32.totalorder %s74, %s90
      %p92 = scmp.eq.s32.totalorder %s19, 0
      %p93 = por %p91, %p92
      %p94 = scmp.le.s32.totalorder 1, %s13
      %p95 = scmp.lt.s32.totalorder %s13, 4
      %p96 = pnand %p94, %p95
      %p97 = pneg %p96
      // Predicated region
      $region9: #{tpu_custom_call.1} parent=5 // pred_check
        _
      $region10: #{tpu_custom_call.1} parent=5 // pred_check_branch
        %99 = sbr.rel (%p96) target = $region12
      $region11: #{tpu_custom_call.1} parent=5 // pred_region
        %s100 = ssub.s32 %s13, 1
        // Predicated region
        $region13: #{tpu_custom_call.1} parent=11 // pred_check
          %p101 = pneg %p60
        $region14: #{tpu_custom_call.1} parent=11 // pred_check_branch
          %103 = sbr.rel (%p101) target = $region16
        $region15: #{tpu_custom_call.1} parent=11 // pred_region
          _
        $region16: #{tpu_custom_call.1} parent=11 // pred_fallthru
          _
      $region12: #{tpu_custom_call.1} parent=5 // pred_fallthru
        _
      %p104 = scmp.lt.s32.totalorder %s13, 3
      // Predicated region
      $region17: #{tpu_custom_call.1} parent=5 // pred_check
        %p105 = pneg %p104
      $region18: #{tpu_custom_call.1} parent=5 // pred_check_branch
        %107 = sbr.rel (%p105) target = $region20
      $region19: #{tpu_custom_call.1} parent=5 // pred_region
        // Predicated region
        $region21: #{tpu_custom_call.1} parent=19 // pred_check
          %p108 = pneg %p33
        $region22: #{tpu_custom_call.1} parent=19 // pred_check_branch
          %110 = sbr.rel (%p108) target = $region24
        $region23: #{tpu_custom_call.1} parent=19 // pred_region
          %s111 = sand.u32 %s23, 1
          %s112 = sand.u32 %s23, 1
          %s113 = smul.addr %s112, 32
          %s114 = scalar_lea.vmem [#allocation5], %s113
          %s115 = smul.addr %s13, 8
          %s116 = scalar_lea.vmem %s1, %s115
          // Predicated region
          $region25: #{tpu_custom_call.1} parent=23 // pred_check
            _
          $region26: #{tpu_custom_call.1} parent=23 // pred_check_branch
            %118 = sbr.rel (0) target = $region28
          $region27: #{tpu_custom_call.1} parent=23 // pred_region
            // Predicated region
            $region29: #{tpu_custom_call.1} parent=27 // pred_check
              _
            $region30: #{tpu_custom_call.1} parent=27 // pred_check_branch
              %120 = sbr.rel (0) target = $region32
            $region31: #{tpu_custom_call.1} parent=27 // pred_region
              // Predicated region
              $region44: #{tpu_custom_call.1} parent=31 // pred_check
                _
              $region45: #{tpu_custom_call.1} parent=31 // pred_check_branch
                %141 = sbr.rel (0) target = $region47
              $region46: #{tpu_custom_call.1} parent=31 // pred_region
                loop: start=0, step=1, limit=1
                $region48: #{tpu_custom_call.1} parent=46 // loop_pre_header
                  _
                $region49: #{tpu_custom_call.1} parent=46 // loop_header
                  %s143 = sphi 0, %s147
                  %p144 = scmp.ge.s32.totalorder %s143, 1
                  %s148 = sphi %s116, %s116
                  %s149 = sphi %s114, %s114
                $region50: #{tpu_custom_call.1} parent=46 // loop_header_branch
                  %146 = sbr.rel (%p144) target = $region54
                $region51: #{tpu_custom_call.1} parent=46 // loop_body
                  %v150 = vld [vmem:[%s148] sm:$0xff]
                  %151 = vst [vmem:[%s149] sm:$0xff] %v150
                  %v152 = vld [vmem:[%s148 + $0x18] sm:$0xff]
                  %153 = vst [vmem:[%s149 + $0x8] sm:$0xff] %v152
                  %v154 = vld [vmem:[%s148 + $0x30] sm:$0xff]
                  %155 = vst [vmem:[%s149 + $0x10] sm:$0xff] %v154
                  %v156 = vld [vmem:[%s148 + $0x48] sm:$0xff]
                  %157 = vst [vmem:[%s149 + $0x18] sm:$0xff] %v156
                $region52: #{tpu_custom_call.1} parent=46 // loop_footer
                  %s147 = sadd.s32 1, %s143
                $region53: #{tpu_custom_call.1} parent=46 // loop_footer_branch
                  %142 = sbr.rel target = $region49
                $region54: #{tpu_custom_call.1} parent=46 // loop_exit
                  _
              $region47: #{tpu_custom_call.1} parent=31 // pred_fallthru
                _
              // Predicated region
              $region55: #{tpu_custom_call.1} parent=31 // pred_check
                _
              $region56: #{tpu_custom_call.1} parent=31 // pred_check_branch
                %159 = sbr.rel target = $region58
              $region57: #{tpu_custom_call.1} parent=31 // pred_region
                _
              $region58: #{tpu_custom_call.1} parent=31 // pred_fallthru
                _
            $region32: #{tpu_custom_call.1} parent=27 // pred_fallthru
              _
            // Predicated region
            $region33: #{tpu_custom_call.1} parent=27 // pred_check
              _
            $region34: #{tpu_custom_call.1} parent=27 // pred_check_branch
              %122 = sbr.rel target = $region36
            $region35: #{tpu_custom_call.1} parent=27 // pred_region
              loop: start=0, step=1, limit=1
              $region37: #{tpu_custom_call.1} parent=35 // loop_pre_header
                _
              $region38: #{tpu_custom_call.1} parent=35 // loop_header
                %s125 = sphi 0, %s129
                %p126 = scmp.ge.s32.totalorder %s125, 1
                %s130 = sphi %s116, %s116
                %s131 = sphi %s114, %s114
              $region39: #{tpu_custom_call.1} parent=35 // loop_header_branch
                %128 = sbr.rel (%p126) target = $region43
              $region40: #{tpu_custom_call.1} parent=35 // loop_body
                %v132 = vld [vmem:[%s130] sm:$0xff]
                %133 = vst [vmem:[%s131] sm:$0xff] %v132
                %v134 = vld [vmem:[%s130 + $0x18] sm:$0xff]
                %135 = vst [vmem:[%s131 + $0x8] sm:$0xff] %v134
                %v136 = vld [vmem:[%s130 + $0x30] sm:$0xff]
                %137 = vst [vmem:[%s131 + $0x10] sm:$0xff] %v136
                %v138 = vld [vmem:[%s130 + $0x48] sm:$0xff]
                %139 = vst [vmem:[%s131 + $0x18] sm:$0xff] %v138
              $region41: #{tpu_custom_call.1} parent=35 // loop_footer
                %s129 = sadd.s32 1, %s125
              $region42: #{tpu_custom_call.1} parent=35 // loop_footer_branch
                %124 = sbr.rel target = $region38
              $region43: #{tpu_custom_call.1} parent=35 // loop_exit
                _
            $region36: #{tpu_custom_call.1} parent=27 // pred_fallthru
              _
          $region28: #{tpu_custom_call.1} parent=23 // pred_fallthru
            _
          %160 = vnop
        $region24: #{tpu_custom_call.1} parent=19 // pred_fallthru
          _
      $region20: #{tpu_custom_call.1} parent=5 // pred_fallthru
        _
      %p161 = scmp.le.s32.totalorder 1, %s13
      %p162 = scmp.lt.s32.totalorder %s13, 4
      %p163 = pnand %p161, %p162
      %p164 = pneg %p163
      // Predicated region
      $region59: #{tpu_custom_call.1} parent=5 // pred_check
        _
      $region60: #{tpu_custom_call.1} parent=5 // pred_check_branch
        %166 = sbr.rel (%p163) target = $region62
      $region61: #{tpu_custom_call.1} parent=5 // pred_region
        %s167 = ssub.s32 %s13, 1
        %s168 = sand.u32 %s26, 1
        %s169 = sand.u32 %s26, 1
        %s170 = smul.addr %s169, 32
        %s171 = scalar_lea.vmem [#allocation5], %s170
        // Predicated region
        $region63: #{tpu_custom_call.1} parent=61 // pred_check
          %p172 = pneg %p39
        $region64: #{tpu_custom_call.1} parent=61 // pred_check_branch
          %174 = sbr.rel (%p172) target = $region66
        $region65: #{tpu_custom_call.1} parent=61 // pred_region
          _
        $region66: #{tpu_custom_call.1} parent=61 // pred_fallthru
          _
        %s175 = sand.u32 %s26, 1
        %s176 = sand.u32 %s26, 1
        %s177 = smul.addr %s176, 32
        %s178 = scalar_lea.vmem [#allocation5], %s177
        %p179 = pneg %p39
        %p180 = pneg %p36
        %p181 = pneg %p60
        %p182 = pneg %p57
        %p183 = pneg %p86
        %p184 = pneg %p83
        %s185 = sand.u32 %s73, 1
        %s186 = scalar_lea.sflag [#allocation7], %s185
        %s187 = sand.u32 %s73, 1
        %s188 = smul.addr %s187, 8
        %s189 = scalar_lea.vmem [#allocation6], %s188
        %v190 = vld [vmem:[%s171 + $0x11] sm:$0x1]
        %v191 = vld [vmem:[%s171 + $0x12] sm:$0x1]
        %v192 = vld [vmem:[%s171 + $0x13] sm:$0x1]
        %v193 = vld [vmem:[%s171 + $0x14] sm:$0x1]
        %v194 = vld [vmem:[%s171 + $0x15] sm:$0x1]
        %195 = vst [vmem:[#allocation2] sm:$0x3] -1e+30
        %s196 = sld [smem:[#allocation4]]
        // While loop
        $region67: #{tpu_custom_call.1} parent=61 // loop_pre_header
          _
        $region68: #{tpu_custom_call.1} parent=61 // loop_header
          %s198 = sphi 0, %s200
          %p199 = scmp.ge.s32.totalorder %s198, %s196
        $region69: #{tpu_custom_call.1} parent=61 // loop_header_branch
          %202 = sbr.rel (%p199) target = $region73
        $region70: #{tpu_custom_call.1} parent=61 // loop_body
          %s203 = smul.u32 %s198, 32
          %s204 = scalar_lea.vmem %s2, %s203
          %v205 = vld [vmem:[%s204] sm:$0xff]
          %v206 = vld [vmem:[%s204 + $0x8] sm:$0xff]
          %v207 = vld [vmem:[%s204 + $0x10] sm:$0xff]
          %v208 = vld [vmem:[%s204 + $0x18] sm:$0xff]
          %vm209 = vcmp.gt.f32.partialorder %v205, 0.0
          %vm210 = vcmp.gt.f32.partialorder %v206, 0.0
          %vm211 = vcmp.gt.f32.partialorder %v207, 0.0
          %vm212 = vcmp.gt.f32.partialorder %v208, 0.0
          %214 = vset.pattern.permute.xlu0 2
          %215 = vperm.xlu0 %214, %v205
          %v216 = vpop.permute.xlu0 %215
          %219 = vset.pattern.permute.xlu0 2
          %220 = vperm.xlu0 %219, %v206
          %v221 = vpop.permute.xlu0 %220
          %224 = vset.pattern.permute.xlu0 2
          %225 = vperm.xlu0 %224, %v207
          %v226 = vpop.permute.xlu0 %225
          %229 = vset.pattern.permute.xlu0 2
          %230 = vperm.xlu0 %229, %v208
          %v231 = vpop.permute.xlu0 %230
          %v233 = vlaneseq
          %v234 = vshrl.u32 %v233, 7
          %v235 = vsub.s32 0, %v234
          %v236 = vrot.slane %v192, %v235
          %v237 = vmin.f32 %v216, %v236
          %v238 = vmin.f32 %v221, %v236
          %v239 = vmin.f32 %v226, %v236
          %v240 = vmin.f32 %v231, %v236
          %241 = vset.pattern.permute.xlu0 0
          %242 = vperm.xlu0 %241, %v205
          %v243 = vpop.permute.xlu0 %242
          %245 = vset.pattern.permute.xlu0 0
          %246 = vperm.xlu0 %245, %v206
          %v247 = vpop.permute.xlu0 %246
          %249 = vset.pattern.permute.xlu0 0
          %250 = vperm.xlu0 %249, %v207
          %v251 = vpop.permute.xlu0 %250
          %253 = vset.pattern.permute.xlu0 0
          %254 = vperm.xlu0 %253, %v208
          %v255 = vpop.permute.xlu0 %254
          %v257 = vlaneseq
          %v258 = vshrl.u32 %v257, 7
          %v259 = vsub.s32 0, %v258
          %v260 = vrot.slane %v190, %v259
          %v261 = vmax.f32 %v243, %v260
          %v262 = vmax.f32 %v247, %v260
          %v263 = vmax.f32 %v251, %v260
          %v264 = vmax.f32 %v255, %v260
          %v265 = vsub.f32 %v237, %v261
          %v266 = vsub.f32 %v238, %v262
          %v267 = vsub.f32 %v239, %v263
          %v268 = vsub.f32 %v240, %v264
          %v269 = vmax.f32 %v265, 0.0
          %v270 = vmax.f32 %v266, 0.0
          %v271 = vmax.f32 %v267, 0.0
          %v272 = vmax.f32 %v268, 0.0
          %273 = vset.pattern.permute.xlu0 3
          %274 = vperm.xlu0 %273, %v205
          %v275 = vpop.permute.xlu0 %274
          %277 = vset.pattern.permute.xlu0 3
          %278 = vperm.xlu0 %277, %v206
          %v279 = vpop.permute.xlu0 %278
          %281 = vset.pattern.permute.xlu0 3
          %282 = vperm.xlu0 %281, %v207
          %v283 = vpop.permute.xlu0 %282
          %285 = vset.pattern.permute.xlu0 3
          %286 = vperm.xlu0 %285, %v208
          %v287 = vpop.permute.xlu0 %286
          %v289 = vlaneseq
          %v290 = vshrl.u32 %v289, 7
          %v291 = vsub.s32 0, %v290
          %v292 = vrot.slane %v193, %v291
          %v293 = vmin.f32 %v275, %v292
          %v294 = vmin.f32 %v279, %v292
          %v295 = vmin.f32 %v283, %v292
          %v296 = vmin.f32 %v287, %v292
          %297 = vset.pattern.permute.xlu0 1
          %298 = vperm.xlu0 %297, %v205
          %v299 = vpop.permute.xlu0 %298
          %301 = vset.pattern.permute.xlu0 1
          %302 = vperm.xlu0 %301, %v206
          %v303 = vpop.permute.xlu0 %302
          %305 = vset.pattern.permute.xlu0 1
          %306 = vperm.xlu0 %305, %v207
          %v307 = vpop.permute.xlu0 %306
          %309 = vset.pattern.permute.xlu0 1
          %310 = vperm.xlu0 %309, %v208
          %v311 = vpop.permute.xlu0 %310
          %v313 = vlaneseq
          %v314 = vshrl.u32 %v313, 7
          %v315 = vsub.s32 0, %v314
          %v316 = vrot.slane %v191, %v315
          %v317 = vmax.f32 %v299, %v316
          %v318 = vmax.f32 %v303, %v316
          %v319 = vmax.f32 %v307, %v316
          %v320 = vmax.f32 %v311, %v316
          %v321 = vsub.f32 %v293, %v317
          %v322 = vsub.f32 %v294, %v318
          %v323 = vsub.f32 %v295, %v319
          %v324 = vsub.f32 %v296, %v320
          %v325 = vmax.f32 %v321, 0.0
          %v326 = vmax.f32 %v322, 0.0
          %v327 = vmax.f32 %v323, 0.0
          %v328 = vmax.f32 %v324, 0.0
          %v329 = vmul.f32 %v269, %v325
          %v330 = vmul.f32 %v270, %v326
          %v331 = vmul.f32 %v271, %v327
          %v332 = vmul.f32 %v272, %v328
          %333 = vset.pattern.permute.xlu0 4
          %334 = vperm.xlu0 %333, %v205
          %v335 = vpop.permute.xlu0 %334
          %337 = vset.pattern.permute.xlu0 4
          %338 = vperm.xlu0 %337, %v206
          %v339 = vpop.permute.xlu0 %338
          %341 = vset.pattern.permute.xlu0 4
          %342 = vperm.xlu0 %341, %v207
          %v343 = vpop.permute.xlu0 %342
          %345 = vset.pattern.permute.xlu0 4
          %346 = vperm.xlu0 %345, %v208
          %v347 = vpop.permute.xlu0 %346
          %v349 = vlaneseq
          %v350 = vshrl.u32 %v349, 7
          %v351 = vsub.s32 0, %v350
          %v352 = vrot.slane %v194, %v351
          %v353 = vadd.f32 %v335, %v352
          %v354 = vadd.f32 %v339, %v352
          %v355 = vadd.f32 %v343, %v352
          %v356 = vadd.f32 %v347, %v352
          %v357 = vsub.f32 %v353, %v329
          %v358 = vsub.f32 %v354, %v330
          %v359 = vsub.f32 %v355, %v331
          %v360 = vsub.f32 %v356, %v332
          %v361 = vrcp.pop %v357
          %v362 = vrcp.pop %v358
          %v363 = vrcp.pop %v359
          %v364 = vrcp.pop %v360
          %v365 = vmul.f32 %v357, %v361
          %v366 = vmul.f32 %v358, %v362
          %v367 = vmul.f32 %v359, %v363
          %v368 = vmul.f32 %v360, %v364
          %v369 = vsub.f32 2.0, %v365
          %v370 = vsub.f32 2.0, %v366
          %v371 = vsub.f32 2.0, %v367
          %v372 = vsub.f32 2.0, %v368
          %v373 = vmul.f32 %v361, %v369
          %v374 = vmul.f32 %v362, %v370
          %v375 = vmul.f32 %v363, %v371
          %v376 = vmul.f32 %v364, %v372
          %v377 = vmul.f32 %v329, %v373
          %v378 = vmul.f32 %v330, %v374
          %v379 = vmul.f32 %v331, %v375
          %v380 = vmul.f32 %v332, %v376
          %v381 = vsel %vm209, 1, 0
          %v382 = vsel %vm210, 1, 0
          %v383 = vsel %vm211, 1, 0
          %v384 = vsel %vm212, 1, 0
          %385 = vset.pattern.permute.xlu0 10
          %386 = vperm.xlu0 %385, %v381
          %v387 = vpop.permute.xlu0 %386
          %388 = vset.pattern.permute.xlu0 10
          %389 = vperm.xlu0 %388, %v382
          %v390 = vpop.permute.xlu0 %389
          %391 = vset.pattern.permute.xlu0 10
          %392 = vperm.xlu0 %391, %v383
          %v393 = vpop.permute.xlu0 %392
          %394 = vset.pattern.permute.xlu0 10
          %395 = vperm.xlu0 %394, %v384
          %v396 = vpop.permute.xlu0 %395
          %vm397 = vcmp.eq.s32.totalorder %v387, 1
          %vm398 = vcmp.eq.s32.totalorder %v390, 1
          %vm399 = vcmp.eq.s32.totalorder %v393, 1
          %vm400 = vcmp.eq.s32.totalorder %v396, 1
          %v401 = vsel %vm397, %v377, -1e+30
          %v402 = vsel %vm398, %v378, -1e+30
          %v403 = vsel %vm399, %v379, -1e+30
          %v404 = vsel %vm400, %v380, -1e+30
          %v405 = vmax.f32 %v401, %v402
          %v406 = vmax.f32 %v403, %v404
          %v407 = vmax.f32 %v405, %v406
          %v408 = vrot.slane %v407, 4
          %v409 = vmax.f32 %v407, %v408
          %v410 = vrot.slane %v409, 2
          %v411 = vmax.f32 %v409, %v410
          %v412 = vrot.slane %v411, 1
          %v413 = vmax.f32 %v411, %v412
          %v414 = vld [vmem:[#allocation2] sm:$0x1]
          %v415 = vmax.f32 %v414, %v413
          %416 = vst [vmem:[#allocation2] sm:$0x1] %v415
          %417 = vset.pattern.permute.xlu0 7
          %418 = vperm.xlu0 %417, %v205
          %v419 = vpop.permute.xlu0 %418
          %421 = vset.pattern.permute.xlu0 7
          %422 = vperm.xlu0 %421, %v206
          %v423 = vpop.permute.xlu0 %422
          %425 = vset.pattern.permute.xlu0 7
          %426 = vperm.xlu0 %425, %v207
          %v427 = vpop.permute.xlu0 %426
          %429 = vset.pattern.permute.xlu0 7
          %430 = vperm.xlu0 %429, %v208
          %v431 = vpop.permute.xlu0 %430
          %v433 = vmin.f32 %v419, %v236
          %v434 = vmin.f32 %v423, %v236
          %v435 = vmin.f32 %v427, %v236
          %v436 = vmin.f32 %v431, %v236
          %437 = vset.pattern.permute.xlu0 5
          %438 = vperm.xlu0 %437, %v205
          %v439 = vpop.permute.xlu0 %438
          %441 = vset.pattern.permute.xlu0 5
          %442 = vperm.xlu0 %441, %v206
          %v443 = vpop.permute.xlu0 %442
          %445 = vset.pattern.permute.xlu0 5
          %446 = vperm.xlu0 %445, %v207
          %v447 = vpop.permute.xlu0 %446
          %449 = vset.pattern.permute.xlu0 5
          %450 = vperm.xlu0 %449, %v208
          %v451 = vpop.permute.xlu0 %450
          %v453 = vmax.f32 %v439, %v260
          %v454 = vmax.f32 %v443, %v260
          %v455 = vmax.f32 %v447, %v260
          %v456 = vmax.f32 %v451, %v260
          %v457 = vsub.f32 %v433, %v453
          %v458 = vsub.f32 %v434, %v454
          %v459 = vsub.f32 %v435, %v455
          %v460 = vsub.f32 %v436, %v456
          %v461 = vmax.f32 %v457, 0.0
          %v462 = vmax.f32 %v458, 0.0
          %v463 = vmax.f32 %v459, 0.0
          %v464 = vmax.f32 %v460, 0.0
          %465 = vset.pattern.permute.xlu0 8
          %466 = vperm.xlu0 %465, %v205
          %v467 = vpop.permute.xlu0 %466
          %469 = vset.pattern.permute.xlu0 8
          %470 = vperm.xlu0 %469, %v206
          %v471 = vpop.permute.xlu0 %470
          %473 = vset.pattern.permute.xlu0 8
          %474 = vperm.xlu0 %473, %v207
          %v475 = vpop.permute.xlu0 %474
          %477 = vset.pattern.permute.xlu0 8
          %478 = vperm.xlu0 %477, %v208
          %v479 = vpop.permute.xlu0 %478
          %v481 = vmin.f32 %v467, %v292
          %v482 = vmin.f32 %v471, %v292
          %v483 = vmin.f32 %v475, %v292
          %v484 = vmin.f32 %v479, %v292
          %485 = vset.pattern.permute.xlu0 6
          %486 = vperm.xlu0 %485, %v205
          %v487 = vpop.permute.xlu0 %486
          %489 = vset.pattern.permute.xlu0 6
          %490 = vperm.xlu0 %489, %v206
          %v491 = vpop.permute.xlu0 %490
          %493 = vset.pattern.permute.xlu0 6
          %494 = vperm.xlu0 %493, %v207
          %v495 = vpop.permute.xlu0 %494
          %497 = vset.pattern.permute.xlu0 6
          %498 = vperm.xlu0 %497, %v208
          %v499 = vpop.permute.xlu0 %498
          %v501 = vmax.f32 %v487, %v316
          %v502 = vmax.f32 %v491, %v316
          %v503 = vmax.f32 %v495, %v316
          %v504 = vmax.f32 %v499, %v316
          %v505 = vsub.f32 %v481, %v501
          %v506 = vsub.f32 %v482, %v502
          %v507 = vsub.f32 %v483, %v503
          %v508 = vsub.f32 %v484, %v504
          %v509 = vmax.f32 %v505, 0.0
          %v510 = vmax.f32 %v506, 0.0
          %v511 = vmax.f32 %v507, 0.0
          %v512 = vmax.f32 %v508, 0.0
          %v513 = vmul.f32 %v461, %v509
          %v514 = vmul.f32 %v462, %v510
          %v515 = vmul.f32 %v463, %v511
          %v516 = vmul.f32 %v464, %v512
          %517 = vset.pattern.permute.xlu0 9
          %518 = vperm.xlu0 %517, %v205
          %v519 = vpop.permute.xlu0 %518
          %521 = vset.pattern.permute.xlu0 9
          %522 = vperm.xlu0 %521, %v206
          %v523 = vpop.permute.xlu0 %522
          %525 = vset.pattern.permute.xlu0 9
          %526 = vperm.xlu0 %525, %v207
          %v527 = vpop.permute.xlu0 %526
          %529 = vset.pattern.permute.xlu0 9
          %530 = vperm.xlu0 %529, %v208
          %v531 = vpop.permute.xlu0 %530
          %v533 = vadd.f32 %v519, %v352
          %v534 = vadd.f32 %v523, %v352
          %v535 = vadd.f32 %v527, %v352
          %v536 = vadd.f32 %v531, %v352
          %v537 = vsub.f32 %v533, %v513
          %v538 = vsub.f32 %v534, %v514
          %v539 = vsub.f32 %v535, %v515
          %v540 = vsub.f32 %v536, %v516
          %v541 = vrcp.pop %v537
          %v542 = vrcp.pop %v538
          %v543 = vrcp.pop %v539
          %v544 = vrcp.pop %v540
          %v545 = vmul.f32 %v537, %v541
          %v546 = vmul.f32 %v538, %v542
          %v547 = vmul.f32 %v539, %v543
          %v548 = vmul.f32 %v540, %v544
          %v549 = vsub.f32 2.0, %v545
          %v550 = vsub.f32 2.0, %v546
          %v551 = vsub.f32 2.0, %v547
          %v552 = vsub.f32 2.0, %v548
          %v553 = vmul.f32 %v541, %v549
          %v554 = vmul.f32 %v542, %v550
          %v555 = vmul.f32 %v543, %v551
          %v556 = vmul.f32 %v544, %v552
          %v557 = vmul.f32 %v513, %v553
          %v558 = vmul.f32 %v514, %v554
          %v559 = vmul.f32 %v515, %v555
          %v560 = vmul.f32 %v516, %v556
          %v561 = vsel %vm397, %v557, -1e+30
          %v562 = vsel %vm398, %v558, -1e+30
          %v563 = vsel %vm399, %v559, -1e+30
          %v564 = vsel %vm400, %v560, -1e+30
          %v565 = vmax.f32 %v561, %v562
          %v566 = vmax.f32 %v563, %v564
          %v567 = vmax.f32 %v565, %v566
          %v568 = vrot.slane %v567, 4
          %v569 = vmax.f32 %v567, %v568
          %v570 = vrot.slane %v569, 2
          %v571 = vmax.f32 %v569, %v570
          %v572 = vrot.slane %v571, 1
          %v573 = vmax.f32 %v571, %v572
          %v574 = vld [vmem:[#allocation2 + $0x1] sm:$0x1]
          %v575 = vmax.f32 %v574, %v573
          %576 = vst [vmem:[#allocation2 + $0x1] sm:$0x1] %v575
        $region71: #{tpu_custom_call.1} parent=61 // loop_footer
          %s200 = sadd.s32 %s198, 1
        $region72: #{tpu_custom_call.1} parent=61 // loop_footer_branch
          %197 = sbr.rel target = $region68
        $region73: #{tpu_custom_call.1} parent=61 // loop_exit
          _
        %v577 = vld [vmem:[#allocation2] sm:$0x3]
        %vm578 = vcmask 1041408
        %v579 = vsel %vm578, %v577, -inf
        %v580 = vrot.slane %v579, 4
        %v581 = vmax.f32 %v579, %v580
        %v582 = vrot.slane %v581, 2
        %v583 = vmax.f32 %v581, %v582
        %v584 = vrot.slane %v583, 1
        %v585 = vmax.f32 %v583, %v584
        %v586 = vld [vmem:[%s171] sm:$0xff]
        %v587 = vld [vmem:[%s171 + $0x8] sm:$0x1f]
        %v588 = vld [vmem:[%s171 + $0x19] sm:$0x1]
        %vm589 = vcmp.gt.f32.partialorder %v588, 0.0
        %vm590 = vcmp.ge.f32.partialorder %v577, %v585
        %v591 = vsel %vm590, 1, 0
        %v592 = vlaneseq
        %v593 = vshrl.u32 %v592, 7
        %v594 = vsub.s32 0, %v593
        %v595 = vrot.slane %v591, %v594
        %vm596 = vcmp.eq.s32.totalorder %v595, 1
        %v597 = vsel %vm596, %v586, 0.0
        %vm598 = vmxor %vm590, 1
        %v599 = vsel %vm598, 1, 0
        %v600 = vrot.slane %v599, 7
        %vm601 = vcmp.ne.s32.totalorder %v600, 0
        %vm602 = vmand %vm590, %vm601
        %v603 = vsel %vm602, 1, 0
        %v604 = vlaneseq
        %v605 = vshrl.u32 %v604, 7
        %v606 = vsub.s32 1, %v605
        %v607 = vrot.slane %v603, %v606
        %vm608 = vcmp.eq.s32.totalorder %v607, 1
        %v610 = vrot.slane %v597, 3
        %v612 = vsel %vm608, %v586, %v610
        %v613 = vsel %vm608, %v587, %v610
        %v614 = vld [vmem:[%s171 + $0x16] sm:$0x7]
        %v616 = vrot.slane %v614, 6
        %v618 = vsub.f32 %v587, %v616
        %v619 = vmul.f32 %v618, %v618
        %v621 = vrot.slane %v619, 2
        %vm623 = vcmask 1042432
        %v624 = vsel %vm623, %v621, 0.0
        %v625 = vrot.slane %v624, 4
        %v626 = vadd.f32 %v624, %v625
        %v627 = vrot.slane %v626, 2
        %v628 = vadd.f32 %v626, %v627
        %v629 = vrot.slane %v628, 1
        %v630 = vadd.f32 %v628, %v629
        %v631 = vsel %vm589, %v630, 0.0
        %vm632 = vcmask 1040384
        %v633 = vsel %vm632, %v631, 0.0
        %634 = vadd.xlane.f32.xlu0 %v633
        %v635 = vpop.xlane.xlu0 %634
        %v636 = vmul.f32 %v586, %v586
        %v638 = vrot.slane %v636, 4
        %v640 = vsel %vm589, 0.0, %v638
        %v641 = vsel %vm632, %v640, 0.0
        %642 = vadd.xlane.f32.xlu0 %v641
        %v643 = vpop.xlane.xlu0 %642
        %v644 = vadd.f32 %v643, 0.0
        %v645 = vmul.f32 %v587, %v587
        %v647 = vrot.slane %v645, 1
        %v649 = vsel %vm589, 0.0, %v647
        %v650 = vsel %vm632, %v649, 0.0
        %651 = vadd.xlane.f32.xlu0 %v650
        %v652 = vpop.xlane.xlu0 %651
        %v653 = vadd.f32 %v644, %v652
        %v654 = vld [vmem:[%s171 + $0xd] sm:$0x3]
        %v655 = vld [vmem:[%s171 + $0xf] sm:$0x3]
        %v657 = vrot.slane %v654, 3
        %v659 = vsub.f32 %v612, %v657
        %v660 = vmul.f32 %v659, %v659
        %v661 = vrsqrt.pop %v612
        %v662 = vmul.f32 %v612, %v661
        %vm663 = vcmp.eq.f32.partialorder %v612, inf
        %v664 = vsel %vm663, %v612, %v662
        %vm665 = vcmp.eq.f32.partialorder %v612, 0.0
        %v666 = vand.u32 %v612, 2147483648
        %v667 = vsel %vm665, %v666, %v664
        %v668 = vrsqrt.pop %v613
        %v669 = vmul.f32 %v613, %v668
        %vm670 = vcmp.eq.f32.partialorder %v613, inf
        %v671 = vsel %vm670, %v613, %v669
        %vm672 = vcmp.eq.f32.partialorder %v613, 0.0
        %v673 = vand.u32 %v613, 2147483648
        %v674 = vsel %vm672, %v673, %v671
        %v676 = vrot.slane %v655, 1
        %v678 = vsub.f32 %v667, %v676
        %v679 = vsub.f32 %v674, %v676
        %v680 = vmul.f32 %v678, %v678
        %v681 = vmul.f32 %v679, %v679
        %vm684 = vcmask 1045504
        %v685 = vrot.slane %v680, 2
        %v686 = vrot.slane %v681, 2
        %v687 = vsel %vm684, %v685, %v686
        %v689 = vadd.f32 %v660, %v687
        %v691 = vrot.slane %v689, 5
        %v693 = vsel %vm578, %v691, 0.0
        %v694 = vrot.slane %v693, 4
        %v695 = vadd.f32 %v693, %v694
        %v696 = vrot.slane %v695, 2
        %v697 = vadd.f32 %v695, %v696
        %v698 = vrot.slane %v697, 1
        %v699 = vadd.f32 %v697, %v698
        %v700 = vsel %vm589, %v699, 0.0
        %v701 = vsel %vm632, %v700, 0.0
        %702 = vadd.xlane.f32.xlu0 %v701
        %v703 = vpop.xlane.xlu0 %702
        %v704 = vsub.f32 %v613, %v585
        %v705 = vmul.f32 %v704, %v704
        %v707 = vrot.slane %v705, 1
        %v709 = vsel %vm589, %v707, 0.0
        %v710 = vsel %vm632, %v709, 0.0
        %711 = vadd.xlane.f32.xlu0 %v710
        %v712 = vpop.xlane.xlu0 %711
        %v714 = vrot.slane %v653, 7
        %v717 = vrot.slane %v703, 6
        %v720 = vrot.slane %v712, 5
        %v722 = vsel %vm632, %v635, %v714
        %v723 = vsel %vm578, %v722, %v717
        %v724 = vsel %vm623, %v723, %v720
        %vm725 = vcmask 1043456
        %v726 = vsel %vm725, %v724, 0.0
        %727 = vst [vmem:[%s189] sm:$0xff] %v726
        %s728 = sand.u32 %s73, 1
        %s729 = scalar_lea.sflag [#allocation7], %s728
        %s730 = sand.u32 %s73, 1
        %s731 = smul.addr %s730, 8
        %s732 = scalar_lea.vmem [#allocation6], %s731
        // Predicated region
        $region74: #{tpu_custom_call.1} parent=61 // pred_check
          %p733 = pneg %p83
        $region75: #{tpu_custom_call.1} parent=61 // pred_check_branch
          %735 = sbr.rel (%p733) target = $region77
        $region76: #{tpu_custom_call.1} parent=61 // pred_region
          %s737 = ssub.s32 128, 128
          %738 = vsyncadd %s729, %s737
          %s739 = smul.addr %s18, 128
          %s740 = scalar_lea.hbm %s3, %s739
          %s742 = sshll.u32 %s732, 4
          %s743 = int_to_ptr.vmem [resolvable:$true] %s742
          %745 = dma.vmem_to_hbm [thread:$0]  %s743, 128, %s740, %s729
        $region77: #{tpu_custom_call.1} parent=61 // pred_fallthru
          _
      $region62: #{tpu_custom_call.1} parent=5 // pred_fallthru
        _
      %p746 = scmp.le.s32.totalorder 2, %s13
      // Predicated region
      $region78: #{tpu_custom_call.1} parent=5 // pred_check
        %p747 = pneg %p746
      $region79: #{tpu_custom_call.1} parent=5 // pred_check_branch
        %749 = sbr.rel (%p747) target = $region81
      $region80: #{tpu_custom_call.1} parent=5 // pred_region
        %s750 = ssub.s32 %s13, 2
        // Predicated region
        $region82: #{tpu_custom_call.1} parent=80 // pred_check
          %p751 = pneg %p89
        $region83: #{tpu_custom_call.1} parent=80 // pred_check_branch
          %753 = sbr.rel (%p751) target = $region85
        $region84: #{tpu_custom_call.1} parent=80 // pred_region
          %s754 = sand.u32 %s74, 1
          %s755 = scalar_lea.sflag [#allocation7], %s754
          %s756 = sand.u32 %s74, 1
          %s757 = smul.addr %s756, 8
          %s758 = scalar_lea.vmem [#allocation6], %s757
          %759 = dma.done %s755, 128
        $region85: #{tpu_custom_call.1} parent=80 // pred_fallthru
          _
      $region81: #{tpu_custom_call.1} parent=5 // pred_fallthru
        _
    $region6: #{tpu_custom_call.1} parent=1 // loop_footer
      %s17 = sadd.s32 1, %s13
    $region7: #{tpu_custom_call.1} parent=1 // loop_footer_branch
      %12 = sbr.rel target = $region3
    $region8: #{tpu_custom_call.1} parent=1 // loop_exit
      _
    %760 = vsyncpa [#allocation7], 1
    %s761 = scalar_lea.sflag [#allocation7], 1
    %762 = vsyncpa %s761, 1

</llo_original>
